<compile_context>
chip_gen: v7x
topology: tpu7x:2x2x1
jax: 0.10.0
libtpu: 0.0.40
codegen_flags: <defaults>
</compile_context>

<pallas_src>
import jax
import jax.numpy as jnp
from jax.experimental import pallas as pl
from jax.experimental.pallas import tpu as pltpu

_LANE = 128


def _round_up(x, m):
    return ((x + m - 1) // m) * m


def spring_kernel(coef_ref, q_ref, p_ref, dq_ref, dp_ref):
    # coef_ref: SMEM (2,) float32 -> [1/m, -k]
    # q_ref, p_ref, dq_ref, dp_ref: VMEM (row_block, lane_tile), fully dense.
    inv_m = coef_ref[0]
    neg_k = coef_ref[1]
    dq_ref[...] = (p_ref[...] * inv_m).astype(dq_ref.dtype)   # dq = p / m
    dp_ref[...] = (q_ref[...] * neg_k).astype(dp_ref.dtype)   # dp = -k * q


def spring_forward(t, X, k, m, *, max_row_block=256):
    """RHS of the spring ODE.  X: (N, 2) -> (N, 2).  t is unused."""
    del t
    N = X.shape[0]
    dtype = X.dtype

    # Precompute coefficients outside the kernel (scalar work, done once).
    coef = jnp.array([1.0 / m, -k], dtype=jnp.float32)

    # Split the interleaved state into two flat component vectors.
    q = X[:, 0]
    p = X[:, 1]

    # Dense 2-D slab layout: last dim multiple of 128, rows multiple of 8.
    lane_tile = 1024 if N >= 8 * 1024 else _LANE
    rows = max(1, -(-N // lane_tile))
    row_block = min(max_row_block, _round_up(rows, 8))
    rows_padded = _round_up(rows, row_block)
    n_padded = rows_padded * lane_tile

    def to_slab(v):
        v = jnp.pad(v, (0, n_padded - N))
        return v.reshape(rows_padded, lane_tile)

    q_slab = to_slab(q)
    p_slab = to_slab(p)

    num_blocks = rows_padded // row_block
    tile_spec = pl.BlockSpec((row_block, lane_tile), lambda i: (i, 0))

    dq_slab, dp_slab = pl.pallas_call(
        spring_kernel,
        out_shape=(
            jax.ShapeDtypeStruct((rows_padded, lane_tile), dtype),
            jax.ShapeDtypeStruct((rows_padded, lane_tile), dtype),
        ),
        grid=(num_blocks,),
        in_specs=[
            pl.BlockSpec(memory_space=pltpu.MemorySpace.SMEM),  # [1/m, -k]
            tile_spec,                                          # q slab
            tile_spec,                                          # p slab
        ],
        out_specs=(tile_spec, tile_spec),
        compiler_params=pltpu.CompilerParams(
            dimension_semantics=("parallel",),
        ),
    )(coef, q_slab, p_slab)

    # Back to the PyTorch-convention (N, 2) layout.
    dq = dq_slab.reshape(-1)[:N]
    dp = dp_slab.reshape(-1)[:N]
    return jnp.stack([dq, dp], axis=1)


def _reference(X, k, m):
    q, p = X[:, 0], X[:, 1]
    return jnp.stack([p / m, -q * k], axis=1)


if __name__ == "__main__":
    # Deterministic parameters (module __init__ takes scalars k, m).
    k_val = 2.0
    m_val = 0.5
    t = jnp.float32(0.0)
    key = jax.random.PRNGKey(0)

    # Small shape consistent with the module's forward (batch of 2-D states).
    N = 8
    X = jax.random.normal(key, (N, 2), dtype=jnp.float32)
    dx = jax.block_until_ready(spring_forward(t, X, k_val, m_val))
    assert dx.shape == X.shape and dx.dtype == X.dtype
    assert jnp.allclose(dx, _reference(X, k_val, m_val), atol=1e-6, rtol=1e-6)

    # Larger, non-multiple-of-tile batch: exercises padding + multi-block grid.
    N2 = 3000
    X2 = jax.random.normal(jax.random.PRNGKey(0), (N2, 2), dtype=jnp.float32)
    dx2 = jax.block_until_ready(spring_forward(t, X2, k_val, m_val, max_row_block=8))
    assert dx2.shape == X2.shape
    assert jnp.allclose(dx2, _reference(X2, k_val, m_val), atol=1e-6, rtol=1e-6)

    print("KERNEL_OK")
</pallas_src>

<mosaic_0001>
module attributes {stable_mosaic.version = 11 : i64} {
  func.func @spring_kernel(%arg0: i32, %arg1: memref<2xf32, #tpu.memory_space<smem>>, %arg2: memref<8x128xf32, #tpu.memory_space<vmem>>, %arg3: memref<8x128xf32, #tpu.memory_space<vmem>>, %arg4: memref<8x128xf32, #tpu.memory_space<vmem>>, %arg5: memref<8x128xf32, #tpu.memory_space<vmem>>) attributes {dimension_semantics = [#tpu.dimension_semantics<parallel>], iteration_bounds = array<i64: 1>, scalar_prefetch = 0 : i64, scratch_operands = 0 : i64, tpu.core_type = #tpu.core_type<tc>, window_params = [{transform_indices = @transform_0, window_bounds = array<i64: 2>}, {transform_indices = @transform_1, window_bounds = array<i64: 8, 128>}, {transform_indices = @transform_2, window_bounds = array<i64: 8, 128>}, {transform_indices = @transform_3, window_bounds = array<i64: 8, 128>}, {transform_indices = @transform_4, window_bounds = array<i64: 8, 128>}]} {
    %c0 = arith.constant 0 : index
    %0 = memref.load %arg1[%c0] : memref<2xf32, #tpu.memory_space<smem>>
    %c1 = arith.constant 1 : index
    %1 = memref.load %arg1[%c1] : memref<2xf32, #tpu.memory_space<smem>>
    %c0_0 = arith.constant 0 : index
    %c0_1 = arith.constant 0 : index
    %2 = vector.load %arg3[%c0_0, %c0_1] : memref<8x128xf32, #tpu.memory_space<vmem>>, vector<8x128xf32>
    %3 = vector.broadcast %0 : f32 to vector<8x128xf32>
    %4 = arith.mulf %2, %3 : vector<8x128xf32>
    %c0_2 = arith.constant 0 : index
    %c0_3 = arith.constant 0 : index
    %5 = vector.load %arg4[%c0_2, %c0_3] : memref<8x128xf32, #tpu.memory_space<vmem>>, vector<8x128xf32>
    tpu.vector_store %arg4[%c0_2, %c0_3], %4 {strides = array<i32>} : memref<8x128xf32, #tpu.memory_space<vmem>>, vector<8x128xf32>,
    %c0_4 = arith.constant 0 : index
    %c0_5 = arith.constant 0 : index
    %6 = vector.load %arg2[%c0_4, %c0_5] : memref<8x128xf32, #tpu.memory_space<vmem>>, vector<8x128xf32>
    %7 = vector.broadcast %1 : f32 to vector<8x128xf32>
    %8 = arith.mulf %6, %7 : vector<8x128xf32>
    %c0_6 = arith.constant 0 : index
    %c0_7 = arith.constant 0 : index
    %9 = vector.load %arg5[%c0_6, %c0_7] : memref<8x128xf32, #tpu.memory_space<vmem>>, vector<8x128xf32>
    tpu.vector_store %arg5[%c0_6, %c0_7], %8 {strides = array<i32>} : memref<8x128xf32, #tpu.memory_space<vmem>>, vector<8x128xf32>,
    return
  }
  func.func @transform_0(%arg0: i32) -> i32 {
    %c0_i32 = arith.constant 0 : i32
    %c0_i32_0 = arith.constant 0 : i32
    return %c0_i32 : i32
  }
  func.func @transform_1(%arg0: i32) -> (i32, i32) {
    %c0_i32 = arith.constant 0 : i32
    %c0_i32_0 = arith.constant 0 : i32
    return %arg0, %c0_i32 : i32, i32
  }
  func.func @transform_2(%arg0: i32) -> (i32, i32) {
    %c0_i32 = arith.constant 0 : i32
    %c0_i32_0 = arith.constant 0 : i32
    return %arg0, %c0_i32 : i32, i32
  }
  func.func @transform_3(%arg0: i32) -> (i32, i32) {
    %c0_i32 = arith.constant 0 : i32
    %c0_i32_0 = arith.constant 0 : i32
    return %arg0, %c0_i32 : i32, i32
  }
  func.func @transform_4(%arg0: i32) -> (i32, i32) {
    %c0_i32 = arith.constant 0 : i32
    %c0_i32_0 = arith.constant 0 : i32
    return %arg0, %c0_i32 : i32, i32
  }
}

</mosaic_0001>

<llo_original>
// kernel: tpu_custom_call.1
$region0: #{tpu_custom_call.1}
  #allocation0 [shape = 'u32[]', space=smem, size = 0x4, offset = 0x4, fixed_abs, tag = 'smem constant byte address 0x4 - core index']
  #allocation1 [shape = 'u32[144,128]{1,0:T(1,128)}', space=vmem, size = 0x12000, scoped, tag = 'internal scratch']
  %s0 = inlined_call_operand.hbm [shape: f32[2], index: 0, kind: input, shape index: {}]
  %s1 = inlined_call_operand.hbm [shape: f32[8,128], index: 1, kind: input, shape index: {}]
  %s2 = inlined_call_operand.hbm [shape: f32[8,128], index: 2, kind: input, shape index: {}]
  %s3 = inlined_call_operand.hbm [shape: f32[8,128], index: 3, kind: output, shape index: {0}]
  %s4 = inlined_call_operand.hbm [shape: f32[8,128], index: 4, kind: output, shape index: {1}]
  %5 = xla_tuple %s3, %s4
  %s6 = sld [smem:[#allocation0]]
  $region42: #{tpu_custom_call.1} parent=0
    _
  %s8 = ssub.s32 1, %s6
  %s9 = scalar_select 0, %s8, %s6
  $region1: #{tpu_custom_call.1} parent=0
    #allocation2 [shape = 'u8[512]{0}', space=smem, size = 0x200, scoped, tag = 'input window, operand 0, single buffered']
    #allocation3 [shape = 's32[1]{0}', space=sflag, size = 0x4, scoped, tag = 'scoped memory for tpu_custom_call.1']
    #allocation4 [shape = 's32[1]{0}', space=sflag, size = 0x4, scoped, tag = 'scoped memory for tpu_custom_call.1']
    #allocation5 [shape = 's32[1]{0}', space=sflag, size = 0x4, scoped, tag = 'scoped memory for tpu_custom_call.1']
    #allocation6 [shape = 'u8[4096]{0}', space=vmem, size = 0x1000, scoped, tag = 'input window, operand 1, single buffered']
    #allocation7 [shape = 'u8[4096]{0}', space=vmem, size = 0x1000, scoped, tag = 'input window, operand 2, single buffered']
    #allocation8 [shape = 's32[1]{0}', space=sflag, size = 0x4, scoped, tag = 'scoped memory for tpu_custom_call.1']
    #allocation9 [shape = 'u8[4096]{0}', space=vmem, size = 0x1000, scoped, tag = 'output window, operand 0, single buffered']
    #allocation10 [shape = 'u8[4096]{0}', space=vmem, size = 0x1000, scoped, tag = 'output window, operand 1, single buffered']
    #allocation11 [shape = 's32[1]{0}', space=sflag, size = 0x4, scoped, tag = 'scoped memory for tpu_custom_call.1']
    %10 = vsyncpa [#allocation5], 0
    %11 = vsyncpa [#allocation3], 0
    %12 = vsyncpa [#allocation8], 0
    %13 = vsyncpa [#allocation4], 0
    %14 = vsyncpa [#allocation11], 0
    // Predicated region
    $region2: #{tpu_custom_call.1} parent=1 // pred_check
      _
    $region3: #{tpu_custom_call.1} parent=1 // pred_check_branch
      %16 = sbr.rel (0) target = $region5
    $region4: #{tpu_custom_call.1} parent=1 // pred_region
      %s18 = ssub.s32 16, 16
      %19 = vsyncadd [#allocation5], %s18
      %22 = dma.hbm_to_smem %s0, 16, [#allocation2], [#allocation5]
    $region5: #{tpu_custom_call.1} parent=1 // pred_fallthru
      _
    // Predicated region
    $region6: #{tpu_custom_call.1} parent=1 // pred_check
      _
    $region7: #{tpu_custom_call.1} parent=1 // pred_check_branch
      %24 = sbr.rel (0) target = $region9
    $region8: #{tpu_custom_call.1} parent=1 // pred_region
      %s26 = ssub.s32 128, 128
      %27 = vsyncadd [#allocation3], %s26
      %s29 = sshll.u32 [#allocation6], 4
      %s30 = int_to_ptr.vmem [resolvable:$true] %s29
      %32 = dma.hbm_to_vmem [thread:$0]  %s1, 128, %s30, [#allocation3]
    $region9: #{tpu_custom_call.1} parent=1 // pred_fallthru
      _
    // Predicated region
    $region10: #{tpu_custom_call.1} parent=1 // pred_check
      _
    $region11: #{tpu_custom_call.1} parent=1 // pred_check_branch
      %34 = sbr.rel (0) target = $region13
    $region12: #{tpu_custom_call.1} parent=1 // pred_region
      %s36 = ssub.s32 128, 128
      %37 = vsyncadd [#allocation8], %s36
      %s39 = sshll.u32 [#allocation7], 4
      %s40 = int_to_ptr.vmem [resolvable:$true] %s39
      %42 = dma.hbm_to_vmem [thread:$0]  %s2, 128, %s40, [#allocation8]
    $region13: #{tpu_custom_call.1} parent=1 // pred_fallthru
      _
    // Predicated region
    $region14: #{tpu_custom_call.1} parent=1 // pred_check
      _
    $region15: #{tpu_custom_call.1} parent=1 // pred_check_branch
      %44 = sbr.rel (0) target = $region17
    $region16: #{tpu_custom_call.1} parent=1 // pred_region
      %45 = dma.done [#allocation5], 16
    $region17: #{tpu_custom_call.1} parent=1 // pred_fallthru
      _
    // Predicated region
    $region18: #{tpu_custom_call.1} parent=1 // pred_check
      _
    $region19: #{tpu_custom_call.1} parent=1 // pred_check_branch
      %47 = sbr.rel (0) target = $region21
    $region20: #{tpu_custom_call.1} parent=1 // pred_region
      %48 = dma.done [#allocation3], 128
    $region21: #{tpu_custom_call.1} parent=1 // pred_fallthru
      _
    // Predicated region
    $region22: #{tpu_custom_call.1} parent=1 // pred_check
      _
    $region23: #{tpu_custom_call.1} parent=1 // pred_check_branch
      %50 = sbr.rel (0) target = $region25
    $region24: #{tpu_custom_call.1} parent=1 // pred_region
      %51 = dma.done [#allocation8], 128
    $region25: #{tpu_custom_call.1} parent=1 // pred_fallthru
      _
    %52 = sfence
    %s53 = sld [smem:[#allocation2]]
    %s54 = sld [smem:[#allocation2 + $0x1]]
    %v55 = vld [vmem:[#allocation7] sm:$0xff]
    %v56 = vstv %s53
    %v57 = vmul.f32 %v55, %v56
    %58 = vst [vmem:[#allocation9] sm:$0xff] %v57
    %v59 = vld [vmem:[#allocation6] sm:$0xff]
    %v60 = vstv %s54
    %v61 = vmul.f32 %v59, %v60
    %62 = vst [vmem:[#allocation10] sm:$0xff] %v61
    // Predicated region
    $region26: #{tpu_custom_call.1} parent=1 // pred_check
      _
    $region27: #{tpu_custom_call.1} parent=1 // pred_check_branch
      %64 = sbr.rel (0) target = $region29
    $region28: #{tpu_custom_call.1} parent=1 // pred_region
      %s66 = ssub.s32 128, 128
      %67 = vsyncadd [#allocation4], %s66
      %s69 = sshll.u32 [#allocation9], 4
      %s70 = int_to_ptr.vmem [resolvable:$true] %s69
      %72 = dma.vmem_to_hbm [thread:$0]  %s70, 128, %s3, [#allocation4]
    $region29: #{tpu_custom_call.1} parent=1 // pred_fallthru
      _
    // Predicated region
    $region30: #{tpu_custom_call.1} parent=1 // pred_check
      _
    $region31: #{tpu_custom_call.1} parent=1 // pred_check_branch
      %74 = sbr.rel (0) target = $region33
    $region32: #{tpu_custom_call.1} parent=1 // pred_region
      %s76 = ssub.s32 128, 128
      %77 = vsyncadd [#allocation11], %s76
      %s79 = sshll.u32 [#allocation10], 4
      %s80 = int_to_ptr.vmem [resolvable:$true] %s79
      %82 = dma.vmem_to_hbm [thread:$0]  %s80, 128, %s4, [#allocation11]
    $region33: #{tpu_custom_call.1} parent=1 // pred_fallthru
      _
    // Predicated region
    $region34: #{tpu_custom_call.1} parent=1 // pred_check
      _
    $region35: #{tpu_custom_call.1} parent=1 // pred_check_branch
      %84 = sbr.rel (0) target = $region37
    $region36: #{tpu_custom_call.1} parent=1 // pred_region
      %85 = dma.done [#allocation4], 128
    $region37: #{tpu_custom_call.1} parent=1 // pred_fallthru
      _
    // Predicated region
    $region38: #{tpu_custom_call.1} parent=1 // pred_check
      _
    $region39: #{tpu_custom_call.1} parent=1 // pred_check_branch
      %87 = sbr.rel (0) target = $region41
    $region40: #{tpu_custom_call.1} parent=1 // pred_region
      %88 = dma.done [#allocation11], 128
    $region41: #{tpu_custom_call.1} parent=1 // pred_fallthru
      _
    %89 = vsyncpa [#allocation3], 1
    %90 = vsyncpa [#allocation8], 1
    %91 = vsyncpa [#allocation4], 1
    %92 = vsyncpa [#allocation11], 1
    %93 = vsyncpa [#allocation5], 1

</llo_original>
